<compile_context>
chip_gen: v6e
topology: v6e:2x2x1
jax: 0.10.0
libtpu: 0.0.40
codegen_flags: <defaults>
</compile_context>

<pallas_src>
import jax
import jax.numpy as jnp
from jax.experimental import pallas as pl
from jax.experimental.pallas import tpu as pltpu


def _mlp_kernel(x_ref, w1t_ref, b1_ref, w2_ref, b2_ref, o_ref):
    # x_ref:  (TB, D_in) f32      w1t_ref: (D_in, H) bf16   b1_ref: (1, H) f32
    # w2_ref: (1, H)    f32       b2_ref:  (1, 1) f32 (SMEM)
    # o_ref:  (TB, 1)   f32

    # ---- layer 1 on the MXU: h = relu(x @ W1^T + b1), f32 accumulation ----
    x_bf = x_ref[...].astype(jnp.bfloat16)                    # VPU cast, free filler
    h = jnp.dot(x_bf, w1t_ref[...],
                preferred_element_type=jnp.float32)           # (TB, H)
    h = jnp.maximum(h + b1_ref[...], 0.0)                     # bias bcast over sublanes

    # ---- layer 2 (N = 1): VPU multiply + lane (XLU) reduce, no MXU trip ----
    z = jnp.sum(h * w2_ref[...], axis=1, keepdims=True)       # (TB, 1)
    z = z + b2_ref[0, 0]                                      # scalar bias from SMEM

    # ---- numerically-stable sigmoid (exp on the EUP, elementwise in f32) ----
    e = jnp.exp(-jnp.abs(z))                                   # in (0, 1], never overflows
    s = 1.0 / (1.0 + e)
    o_ref[...] = jnp.where(z >= 0.0, s, 1.0 - s).astype(o_ref.dtype)


def _round_up(n, m):
    return -(-n // m) * m


def neural_net_forward(x, w1, b1, w2, b2, *, tb=2048):
    """Forward pass of NeuralNet.

    x:  (B, D_in) f32
    w1: (H, D_in) f32   -- PyTorch nn.Linear(D_in, H).weight layout
    b1: (H,)      f32
    w2: (1, H)    f32   -- PyTorch nn.Linear(H, 1).weight layout
    b2: (1,)      f32
    returns: (B, 1) f32
    """
    B, d_in = x.shape
    H = w1.shape[0]

    assert tb % 128 == 0, "batch tile must be a multiple of the 128-lane width"
    # Collapse small batches to a single grid step; cap the tile at tb.
    TB = min(tb, _round_up(B, 128))
    n_tiles = pl.cdiv(B, TB)                 # ragged last block masked by Pallas

    # Tiny, one-time parameter prep (resident blocks inside the kernel).
    w1t_bf = w1.T.astype(jnp.bfloat16)                       # (D_in, H) bf16
    b1_row = b1.reshape(1, H).astype(jnp.float32)            # (1, H)    f32
    w2_row = w2.reshape(1, H).astype(jnp.float32)            # (1, H)    f32
    b2_2d = b2.reshape(1, 1).astype(jnp.float32)             # (1, 1)    f32 (SMEM)

    out = pl.pallas_call(
        _mlp_kernel,
        out_shape=jax.ShapeDtypeStruct((B, 1), jnp.float32),
        grid=(n_tiles,),
        in_specs=[
            pl.BlockSpec((TB, d_in), lambda i: (i, 0)),      # x batch tile, natural layout
            pl.BlockSpec((d_in, H), lambda i: (0, 0)),       # W1^T (resident)
            pl.BlockSpec((1, H), lambda i: (0, 0)),          # b1 row (resident)
            pl.BlockSpec((1, H), lambda i: (0, 0)),          # w2 row (resident)
            pl.BlockSpec(memory_space=pltpu.SMEM),           # b2 scalar
        ],
        out_specs=pl.BlockSpec((TB, 1), lambda i: (i, 0)),
        compiler_params=pltpu.CompilerParams(
            dimension_semantics=("parallel",)),              # independent batch tiles
    )(x, w1t_bf, b1_row, w2_row, b2_2d)

    return out


def _ref_forward(x, w1, b1, w2, b2):
    h = jnp.maximum(x @ w1.T + b1, 0.0)
    return jax.nn.sigmoid(h @ w2.T + b2)


def _check(x, w1, b1, w2, b2, out):
    # Exact-math check: reference with the same bf16 rounding of the MXU inputs.
    ref_matched = _ref_forward(
        x.astype(jnp.bfloat16).astype(jnp.float32),
        w1.astype(jnp.bfloat16).astype(jnp.float32), b1, w2, b2)
    assert jnp.allclose(out, ref_matched, atol=1e-4, rtol=1e-4)
    # Full-precision module check (bf16 first-matmul inputs => small tolerance).
    ref_f32 = _ref_forward(x, w1, b1, w2, b2)
    assert jnp.allclose(out, ref_f32, atol=5e-3)


if __name__ == "__main__":
    input_size = 16
    hidden_size = 32

    key = jax.random.PRNGKey(0)
    kx, kw1, kb1, kw2, kb2, kx2 = jax.random.split(key, 6)

    # Parameters in PyTorch nn.Linear layout: weight = (out_features, in_features).
    w1 = jax.random.normal(kw1, (hidden_size, input_size), dtype=jnp.float32) * 0.1
    b1 = jax.random.normal(kb1, (hidden_size,), dtype=jnp.float32) * 0.1
    w2 = jax.random.normal(kw2, (1, hidden_size), dtype=jnp.float32) * 0.1
    b2 = jax.random.normal(kb2, (1,), dtype=jnp.float32) * 0.1

    # Case 1: batch not a multiple of 128 -> single grid step with a ragged
    # (masked) block; TB collapses to round_up(200, 128) = 256.
    batch = 200
    x = jax.random.normal(kx, (batch, input_size), dtype=jnp.float32)
    out = neural_net_forward(x, w1, b1, w2, b2)
    jax.block_until_ready(out)
    assert out.shape == (batch, 1)
    _check(x, w1, b1, w2, b2, out)

    # Case 2 (coverage only): multi-step parallel batch grid, grid=(3,).
    batch2 = 384
    x2 = jax.random.normal(kx2, (batch2, input_size), dtype=jnp.float32)
    out2 = neural_net_forward(x2, w1, b1, w2, b2, tb=128)
    jax.block_until_ready(out2)
    assert out2.shape == (batch2, 1)
    _check(x2, w1, b1, w2, b2, out2)

    print("KERNEL_OK")
</pallas_src>

<mosaic_0001>
module attributes {stable_mosaic.version = 11 : i64} {
  func.func @_mlp_kernel(%arg0: i32, %arg1: memref<256x16xf32, #tpu.memory_space<vmem>>, %arg2: memref<16x32xbf16, #tpu.memory_space<vmem>>, %arg3: memref<1x32xf32, #tpu.memory_space<vmem>>, %arg4: memref<1x32xf32, #tpu.memory_space<vmem>>, %arg5: memref<1x1xf32, #tpu.memory_space<smem>>, %arg6: memref<256x1xf32, #tpu.memory_space<vmem>>) attributes {dimension_semantics = [#tpu.dimension_semantics<parallel>], iteration_bounds = array<i64: 1>, scalar_prefetch = 0 : i64, scratch_operands = 0 : i64, tpu.core_type = #tpu.core_type<tc>, window_params = [{transform_indices = @transform_0, window_bounds = array<i64: 256, 16>}, {pipeline_mode = #tpu.pipeline_mode<synchronous>, transform_indices = @transform_1, window_bounds = array<i64: 16, 32>}, {pipeline_mode = #tpu.pipeline_mode<synchronous>, transform_indices = @transform_2, window_bounds = array<i64: 1, 32>}, {pipeline_mode = #tpu.pipeline_mode<synchronous>, transform_indices = @transform_3, window_bounds = array<i64: 1, 32>}, {transform_indices = @transform_4, window_bounds = array<i64: 1, 1>}, {transform_indices = @transform_5, window_bounds = array<i64: 256, 1>}]} {
    %c0 = arith.constant 0 : index
    %c0_0 = arith.constant 0 : index
    %0 = vector.load %arg1[%c0, %c0_0] : memref<256x16xf32, #tpu.memory_space<vmem>>, vector<256x16xf32>
    %1 = arith.truncf %0 : vector<256x16xf32> to vector<256x16xbf16>
    %c0_1 = arith.constant 0 : index
    %c0_2 = arith.constant 0 : index
    %2 = vector.load %arg2[%c0_1, %c0_2] : memref<16x32xbf16, #tpu.memory_space<vmem>>, vector<16x32xbf16>
    %cst = arith.constant dense<0.000000e+00> : vector<256x32xf32>
    %3 = tpu.matmul %1, %2, %cst {dimension_numbers = #tpu.dot_dimension_numbers<[1], [0], [0], [1], [0, 0, 1, 1], [], []>} : vector<256x16xbf16>, vector<16x32xbf16>, vector<256x32xf32> -> vector<256x32xf32>
    %c0_3 = arith.constant 0 : index
    %c0_4 = arith.constant 0 : index
    %4 = vector.load %arg3[%c0_3, %c0_4] : memref<1x32xf32, #tpu.memory_space<vmem>>, vector<1x32xf32>
    %5 = vector.broadcast %4 : vector<1x32xf32> to vector<256x32xf32>
    %6 = arith.addf %3, %5 : vector<256x32xf32>
    %cst_5 = arith.constant 0.000000e+00 : f32
    %7 = vector.broadcast %cst_5 : f32 to vector<256x32xf32>
    %8 = arith.maximumf %6, %7 : vector<256x32xf32>
    %c0_6 = arith.constant 0 : index
    %c0_7 = arith.constant 0 : index
    %9 = vector.load %arg4[%c0_6, %c0_7] : memref<1x32xf32, #tpu.memory_space<vmem>>, vector<1x32xf32>
    %10 = vector.broadcast %9 : vector<1x32xf32> to vector<256x32xf32>
    %11 = arith.mulf %8, %10 : vector<256x32xf32>
    %cst_8 = arith.constant dense<0.000000e+00> : vector<256xf32>
    %12 = vector.multi_reduction <add>, %11, %cst_8 [1] : vector<256x32xf32> to vector<256xf32>
    %13 = vector.shape_cast %12 : vector<256xf32> to vector<256x1xf32>
    %c0_9 = arith.constant 0 : index
    %c0_10 = arith.constant 0 : index
    %14 = memref.load %arg5[%c0_9, %c0_10] : memref<1x1xf32, #tpu.memory_space<smem>>
    %15 = vector.broadcast %14 : f32 to vector<256x1xf32>
    %16 = arith.addf %13, %15 : vector<256x1xf32>
    %17 = math.absf %16 : vector<256x1xf32>
    %cst_11 = arith.constant 0.000000e+00 : f32
    %18 = vector.broadcast %cst_11 : f32 to vector<256x1xf32>
    %19 = arith.subf %18, %17 : vector<256x1xf32>
    %20 = math.exp %19 : vector<256x1xf32>
    %cst_12 = arith.constant 1.000000e+00 : f32
    %21 = vector.broadcast %cst_12 : f32 to vector<256x1xf32>
    %22 = arith.addf %21, %20 : vector<256x1xf32>
    %cst_13 = arith.constant 1.000000e+00 : f32
    %23 = vector.broadcast %cst_13 : f32 to vector<256x1xf32>
    %24 = arith.divf %23, %22 : vector<256x1xf32>
    %cst_14 = arith.constant 0.000000e+00 : f32
    %25 = vector.broadcast %cst_14 : f32 to vector<256x1xf32>
    %26 = arith.cmpf oge, %16, %25 : vector<256x1xf32>
    %cst_15 = arith.constant 1.000000e+00 : f32
    %27 = vector.broadcast %cst_15 : f32 to vector<256x1xf32>
    %28 = arith.subf %27, %24 : vector<256x1xf32>
    %29 = arith.select %26, %24, %28 : vector<256x1xi1>, vector<256x1xf32>
    %c0_16 = arith.constant 0 : index
    %c0_17 = arith.constant 0 : index
    %30 = vector.load %arg6[%c0_16, %c0_17] : memref<256x1xf32, #tpu.memory_space<vmem>>, vector<256x1xf32>
    tpu.vector_store %arg6[%c0_16, %c0_17], %29 {strides = array<i32>} : memref<256x1xf32, #tpu.memory_space<vmem>>, vector<256x1xf32>,
    return
  }
  func.func @transform_0(%arg0: i32) -> (i32, i32) {
    %c0_i32 = arith.constant 0 : i32
    %c0_i32_0 = arith.constant 0 : i32
    return %arg0, %c0_i32 : i32, i32
  }
  func.func @transform_1(%arg0: i32) -> (i32, i32) {
    %c0_i32 = arith.constant 0 : i32
    %c0_i32_0 = arith.constant 0 : i32
    %c0_i32_1 = arith.constant 0 : i32
    return %c0_i32, %c0_i32_0 : i32, i32
  }
  func.func @transform_2(%arg0: i32) -> (i32, i32) {
    %c0_i32 = arith.constant 0 : i32
    %c0_i32_0 = arith.constant 0 : i32
    %c0_i32_1 = arith.constant 0 : i32
    return %c0_i32, %c0_i32_0 : i32, i32
  }
  func.func @transform_3(%arg0: i32) -> (i32, i32) {
    %c0_i32 = arith.constant 0 : i32
    %c0_i32_0 = arith.constant 0 : i32
    %c0_i32_1 = arith.constant 0 : i32
    return %c0_i32, %c0_i32_0 : i32, i32
  }
  func.func @transform_4(%arg0: i32) -> (i32, i32) {
    %c0_i32 = arith.constant 0 : i32
    %c0_i32_0 = arith.constant 0 : i32
    %c0_i32_1 = arith.constant 0 : i32
    return %c0_i32, %c0_i32_0 : i32, i32
  }
  func.func @transform_5(%arg0: i32) -> (i32, i32) {
    %c0_i32 = arith.constant 0 : i32
    %c0_i32_0 = arith.constant 0 : i32
    return %arg0, %c0_i32 : i32, i32
  }
}

</mosaic_0001>

<llo_original>
// kernel: tpu_custom_call.1
$region0: #{tpu_custom_call.1}
  #allocation0 [shape = 'u32[]', space=smem, size = 0x4, offset = 0x4, fixed_abs, tag = 'smem constant byte address 0x4 - core index']
  #allocation1 [shape = 'u32[144,128]{1,0:T(1,128)}', space=vmem, size = 0x12000, scoped, tag = 'internal scratch']
  #allocation2 [shape = 'f32[1,1]{1,0:T(1,128)S(6)}', space=smem, size = 0x200, scoped, tag = 'scoped memory for tpu_custom_call.1']
  %s0 = inlined_call_operand.vmem [shape: f32[200,16], index: 0, kind: input, shape index: {}]
  %s1 = inlined_call_operand.vmem [shape: bf16[16,32], index: 1, kind: input, shape index: {}]
  %s2 = inlined_call_operand.vmem [shape: f32[1,32], index: 2, kind: input, shape index: {}]
  %s3 = inlined_call_operand.vmem [shape: f32[1,32], index: 3, kind: input, shape index: {}]
  %s4 = inlined_call_operand.<no memory space> [shape: f32[1,1], index: 4, kind: input, shape index: {}]
  %s5 = inlined_call_operand.vmem [shape: f32[200,1], index: 5, kind: output, shape index: {}]
  %s6 = sld [smem:[#allocation0]]
  $region64: #{tpu_custom_call.1} parent=0
    _
  %s8 = ssub.s32 1, %s6
  %s9 = scalar_select 0, %s8, %s6
  %10 = sst [smem:[#allocation2]] %s4
  $region1: #{tpu_custom_call.1} parent=0
    #allocation3 [shape = 'u8[131072]{0}', space=vmem, size = 0x20000, scoped, tag = 'output window, operand 0, single buffered']
    // Predicated region
    $region2: #{tpu_custom_call.1} parent=1 // pred_check
      _
    $region3: #{tpu_custom_call.1} parent=1 // pred_check_branch
      %12 = sbr.rel (0) target = $region5
    $region4: #{tpu_custom_call.1} parent=1 // pred_region
      _
    $region5: #{tpu_custom_call.1} parent=1 // pred_fallthru
      _
    // Predicated region
    $region6: #{tpu_custom_call.1} parent=1 // pred_check
      _
    $region7: #{tpu_custom_call.1} parent=1 // pred_check_branch
      %14 = sbr.rel (0) target = $region9
    $region8: #{tpu_custom_call.1} parent=1 // pred_region
      _
    $region9: #{tpu_custom_call.1} parent=1 // pred_fallthru
      _
    // Predicated region
    $region10: #{tpu_custom_call.1} parent=1 // pred_check
      _
    $region11: #{tpu_custom_call.1} parent=1 // pred_check_branch
      %16 = sbr.rel (0) target = $region13
    $region12: #{tpu_custom_call.1} parent=1 // pred_region
      _
    $region13: #{tpu_custom_call.1} parent=1 // pred_fallthru
      _
    // Predicated region
    $region14: #{tpu_custom_call.1} parent=1 // pred_check
      _
    $region15: #{tpu_custom_call.1} parent=1 // pred_check_branch
      %18 = sbr.rel (0) target = $region17
    $region16: #{tpu_custom_call.1} parent=1 // pred_region
      _
    $region17: #{tpu_custom_call.1} parent=1 // pred_fallthru
      _
    // Predicated region
    $region18: #{tpu_custom_call.1} parent=1 // pred_check
      _
    $region19: #{tpu_custom_call.1} parent=1 // pred_check_branch
      %20 = sbr.rel (0) target = $region21
    $region20: #{tpu_custom_call.1} parent=1 // pred_region
      _
    $region21: #{tpu_custom_call.1} parent=1 // pred_fallthru
      _
    %v22 = vld [vmem:[%s0] sm:$0xff]
    %v23 = vld [vmem:[%s0 + $0x8] sm:$0xff]
    %v24 = vld [vmem:[%s0 + $0x10] sm:$0xff]
    %v25 = vld [vmem:[%s0 + $0x18] sm:$0xff]
    %v26 = vld [vmem:[%s0 + $0x20] sm:$0xff]
    %v27 = vld [vmem:[%s0 + $0x28] sm:$0xff]
    %v28 = vld [vmem:[%s0 + $0x30] sm:$0xff]
    %v29 = vld [vmem:[%s0 + $0x38] sm:$0xff]
    %v30 = vld [vmem:[%s0 + $0x40] sm:$0xff]
    %v31 = vld [vmem:[%s0 + $0x48] sm:$0xff]
    %v32 = vld [vmem:[%s0 + $0x50] sm:$0xff]
    %v33 = vld [vmem:[%s0 + $0x58] sm:$0xff]
    %v34 = vld [vmem:[%s0 + $0x60] sm:$0xff]
    %v35 = vld [vmem:[%s0 + $0x68] sm:$0xff]
    %v36 = vld [vmem:[%s0 + $0x70] sm:$0xff]
    %v37 = vld [vmem:[%s0 + $0x78] sm:$0xff]
    %v38 = vld [vmem:[%s0 + $0x80] sm:$0xff]
    %v39 = vld [vmem:[%s0 + $0x88] sm:$0xff]
    %v40 = vld [vmem:[%s0 + $0x90] sm:$0xff]
    %v41 = vld [vmem:[%s0 + $0x98] sm:$0xff]
    %v42 = vld [vmem:[%s0 + $0xa0] sm:$0xff]
    %v43 = vld [vmem:[%s0 + $0xa8] sm:$0xff]
    %v44 = vld [vmem:[%s0 + $0xb0] sm:$0xff]
    %v45 = vld [vmem:[%s0 + $0xb8] sm:$0xff]
    %v46 = vld [vmem:[%s0 + $0xc0] sm:$0xff]
    %v47 = vld [vmem:[%s0 + $0xc8] sm:$0xff]
    %v48 = vld [vmem:[%s0 + $0xd0] sm:$0xff]
    %v49 = vld [vmem:[%s0 + $0xd8] sm:$0xff]
    %v50 = vld [vmem:[%s0 + $0xe0] sm:$0xff]
    %v51 = vld [vmem:[%s0 + $0xe8] sm:$0xff]
    %v52 = vld [vmem:[%s0 + $0xf0] sm:$0xff]
    %v53 = vld [vmem:[%s0 + $0xf8] sm:$0xff]
    %v54 = vpack.c.bf16 %v23, %v22
    %v55 = vpack.c.bf16 %v25, %v24
    %v56 = vpack.c.bf16 %v27, %v26
    %v57 = vpack.c.bf16 %v29, %v28
    %v58 = vpack.c.bf16 %v31, %v30
    %v59 = vpack.c.bf16 %v33, %v32
    %v60 = vpack.c.bf16 %v35, %v34
    %v61 = vpack.c.bf16 %v37, %v36
    %v62 = vpack.c.bf16 %v39, %v38
    %v63 = vpack.c.bf16 %v41, %v40
    %v64 = vpack.c.bf16 %v43, %v42
    %v65 = vpack.c.bf16 %v45, %v44
    %v66 = vpack.c.bf16 %v47, %v46
    %v67 = vpack.c.bf16 %v49, %v48
    %v68 = vpack.c.bf16 %v51, %v50
    %v69 = vpack.c.bf16 %v53, %v52
    %v70 = vld [vmem:[%s1] sm:$0xf]
    %v71 = vld [vmem:[%s1 + $0x4] sm:$0xf]
    %v72 = vld [vmem:[%s2] sm:$0x1]
    %v74 = vlaneseq
    %v75 = vshrl.u32 %v74, 7
    %v76 = vsub.s32 0, %v75
    %v77 = vrot.slane %v72, %v76
    %v81 = vunpack.c.l.b16 %v70
    %v82 = vunpack.c.l.b16 %v71
    %v83 = vpack.c.b16 %v82, %v81
    %vm85 = vcmask 130048
    %v87 = vsel %vm85, %v54, 0
    %v90 = vsel %vm85, %v55, 0
    %v93 = vsel %vm85, %v56, 0
    %v96 = vsel %vm85, %v57, 0
    %v99 = vsel %vm85, %v58, 0
    %v102 = vsel %vm85, %v59, 0
    %v105 = vsel %vm85, %v60, 0
    %v108 = vsel %vm85, %v61, 0
    %v111 = vsel %vm85, %v62, 0
    %v114 = vsel %vm85, %v63, 0
    %v117 = vsel %vm85, %v64, 0
    %v120 = vsel %vm85, %v65, 0
    %v123 = vsel %vm85, %v66, 0
    %v126 = vsel %vm85, %v67, 0
    %v129 = vsel %vm85, %v68, 0
    %v132 = vsel %vm85, %v69, 0
    %134 = vmatprep.subr.bf16.mxu0 0
    %135 = vmatpush1.bf16.msra.mxu0 0
    %136 = vmatprep.subr.bf16.mxu0 0
    %137 = vmatpush1.bf16.msra.mxu0 0
    %138 = vmatprep.subr.bf16.mxu0 0
    %139 = vmatpush1.bf16.msra.mxu0 0
    %140 = vmatprep.subr.bf16.mxu0 0
    %141 = vmatpush1.bf16.msra.mxu0 0
    %142 = vmatprep.subr.bf16.mxu0 0
    %143 = vmatpush1.bf16.msra.mxu0 0
    %144 = vmatprep.subr.bf16.mxu0 0
    %145 = vmatpush1.bf16.msra.mxu0 0
    %146 = vmatprep.subr.bf16.mxu0 0
    %147 = vmatpush1.bf16.msra.mxu0 0
    %148 = vmatprep.subr.bf16.mxu0 0
    %149 = vmatpush1.bf16.msra.mxu0 %v83
    %150 = vmatprep.subr.bf16.mxu0 0
    %151 = vmatpush2.bf16.msra.mxu0 0
    %152 = vmatprep.subr.bf16.mxu0 0
    %153 = vmatpush2.bf16.msra.mxu0 0
    %154 = vmatprep.subr.bf16.mxu0 0
    %155 = vmatpush2.bf16.msra.mxu0 0
    %156 = vmatprep.subr.bf16.mxu0 0
    %157 = vmatpush2.bf16.msra.mxu0 0
    %158 = vmatprep.subr.bf16.mxu0 0
    %159 = vmatpush2.bf16.msra.mxu0 0
    %160 = vmatprep.subr.bf16.mxu0 0
    %161 = vmatpush2.bf16.msra.mxu0 0
    %162 = vmatprep.subr.bf16.mxu0 0
    %163 = vmatpush2.bf16.msra.mxu0 0
    %164 = vmatprep.subr.bf16.mxu0 0
    %165 = vmatpush2.bf16.msra.mxu0 0
    %166 = vmatprep.mubr.bf16.mxu0 0
    %167 = vmatmul.mubr.bf16.gmra.mxu0 %v87
    %v168 = vpop.f32.mrf.mxu0
    %v169 = vadd.f32 %v77, %v168
    %v170 = vpop.f32.mrf.mxu0
    %v171 = vpop.f32.mrf.mxu0
    %v172 = vadd.f32 %v77, %v171
    %v173 = vpop.f32.mrf.mxu0
    %174 = vmatprep.mubr.bf16.mxu0 0
    %175 = vmatmul.mubr.bf16.gmra.mxu0 %v90
    %v176 = vpop.f32.mrf.mxu0
    %v177 = vadd.f32 %v77, %v176
    %v178 = vpop.f32.mrf.mxu0
    %v179 = vpop.f32.mrf.mxu0
    %v180 = vadd.f32 %v77, %v179
    %v181 = vpop.f32.mrf.mxu0
    %182 = vmatprep.mubr.bf16.mxu0 0
    %183 = vmatmul.mubr.bf16.gmra.mxu0 %v93
    %v184 = vpop.f32.mrf.mxu0
    %v185 = vadd.f32 %v77, %v184
    %v186 = vpop.f32.mrf.mxu0
    %v187 = vpop.f32.mrf.mxu0
    %v188 = vadd.f32 %v77, %v187
    %v189 = vpop.f32.mrf.mxu0
    %190 = vmatprep.mubr.bf16.mxu0 0
    %191 = vmatmul.mubr.bf16.gmra.mxu0 %v96
    %v192 = vpop.f32.mrf.mxu0
    %v193 = vadd.f32 %v77, %v192
    %v194 = vpop.f32.mrf.mxu0
    %v195 = vpop.f32.mrf.mxu0
    %v196 = vadd.f32 %v77, %v195
    %v197 = vpop.f32.mrf.mxu0
    %198 = vmatprep.mubr.bf16.mxu0 0
    %199 = vmatmul.mubr.bf16.gmra.mxu0 %v99
    %v200 = vpop.f32.mrf.mxu0
    %v201 = vadd.f32 %v77, %v200
    %v202 = vpop.f32.mrf.mxu0
    %v203 = vpop.f32.mrf.mxu0
    %v204 = vadd.f32 %v77, %v203
    %v205 = vpop.f32.mrf.mxu0
    %206 = vmatprep.mubr.bf16.mxu0 0
    %207 = vmatmul.mubr.bf16.gmra.mxu0 %v102
    %v208 = vpop.f32.mrf.mxu0
    %v209 = vadd.f32 %v77, %v208
    %v210 = vpop.f32.mrf.mxu0
    %v211 = vpop.f32.mrf.mxu0
    %v212 = vadd.f32 %v77, %v211
    %v213 = vpop.f32.mrf.mxu0
    %214 = vmatprep.mubr.bf16.mxu0 0
    %215 = vmatmul.mubr.bf16.gmra.mxu0 %v105
    %v216 = vpop.f32.mrf.mxu0
    %v217 = vadd.f32 %v77, %v216
    %v218 = vpop.f32.mrf.mxu0
    %v219 = vpop.f32.mrf.mxu0
    %v220 = vadd.f32 %v77, %v219
    %v221 = vpop.f32.mrf.mxu0
    %222 = vmatprep.mubr.bf16.mxu0 0
    %223 = vmatmul.mubr.bf16.gmra.mxu0 %v108
    %v224 = vpop.f32.mrf.mxu0
    %v225 = vadd.f32 %v77, %v224
    %v226 = vpop.f32.mrf.mxu0
    %v227 = vpop.f32.mrf.mxu0
    %v228 = vadd.f32 %v77, %v227
    %v229 = vpop.f32.mrf.mxu0
    %230 = vmatprep.mubr.bf16.mxu0 0
    %231 = vmatmul.mubr.bf16.gmra.mxu0 %v111
    %v232 = vpop.f32.mrf.mxu0
    %v233 = vadd.f32 %v77, %v232
    %v234 = vpop.f32.mrf.mxu0
    %v235 = vpop.f32.mrf.mxu0
    %v236 = vadd.f32 %v77, %v235
    %v237 = vpop.f32.mrf.mxu0
    %238 = vmatprep.mubr.bf16.mxu0 0
    %239 = vmatmul.mubr.bf16.gmra.mxu0 %v114
    %v240 = vpop.f32.mrf.mxu0
    %v241 = vadd.f32 %v77, %v240
    %v242 = vpop.f32.mrf.mxu0
    %v243 = vpop.f32.mrf.mxu0
    %v244 = vadd.f32 %v77, %v243
    %v245 = vpop.f32.mrf.mxu0
    %246 = vmatprep.mubr.bf16.mxu0 0
    %247 = vmatmul.mubr.bf16.gmra.mxu0 %v117
    %v248 = vpop.f32.mrf.mxu0
    %v249 = vadd.f32 %v77, %v248
    %v250 = vpop.f32.mrf.mxu0
    %v251 = vpop.f32.mrf.mxu0
    %v252 = vadd.f32 %v77, %v251
    %v253 = vpop.f32.mrf.mxu0
    %254 = vmatprep.mubr.bf16.mxu0 0
    %255 = vmatmul.mubr.bf16.gmra.mxu0 %v120
    %v256 = vpop.f32.mrf.mxu0
    %v257 = vadd.f32 %v77, %v256
    %v258 = vpop.f32.mrf.mxu0
    %v259 = vpop.f32.mrf.mxu0
    %v260 = vadd.f32 %v77, %v259
    %v261 = vpop.f32.mrf.mxu0
    %262 = vmatprep.mubr.bf16.mxu0 0
    %263 = vmatmul.mubr.bf16.gmra.mxu0 %v123
    %v264 = vpop.f32.mrf.mxu0
    %v265 = vadd.f32 %v77, %v264
    %v266 = vpop.f32.mrf.mxu0
    %v267 = vpop.f32.mrf.mxu0
    %v268 = vadd.f32 %v77, %v267
    %v269 = vpop.f32.mrf.mxu0
    %270 = vmatprep.mubr.bf16.mxu0 0
    %271 = vmatmul.mubr.bf16.gmra.mxu0 %v126
    %v272 = vpop.f32.mrf.mxu0
    %v273 = vadd.f32 %v77, %v272
    %v274 = vpop.f32.mrf.mxu0
    %v275 = vpop.f32.mrf.mxu0
    %v276 = vadd.f32 %v77, %v275
    %v277 = vpop.f32.mrf.mxu0
    %278 = vmatprep.mubr.bf16.mxu0 0
    %279 = vmatmul.mubr.bf16.gmra.mxu0 %v129
    %v280 = vpop.f32.mrf.mxu0
    %v281 = vadd.f32 %v77, %v280
    %v282 = vpop.f32.mrf.mxu0
    %v283 = vpop.f32.mrf.mxu0
    %v284 = vadd.f32 %v77, %v283
    %v285 = vpop.f32.mrf.mxu0
    %286 = vmatprep.mubr.bf16.mxu0 0
    %287 = vmatmul.mubr.bf16.gmra.mxu0 %v132
    %v288 = vpop.f32.mrf.mxu0
    %v289 = vadd.f32 %v77, %v288
    %v290 = vpop.f32.mrf.mxu0
    %v291 = vpop.f32.mrf.mxu0
    %v292 = vadd.f32 %v77, %v291
    %v293 = vpop.f32.mrf.mxu0
    %294 = vdwg.mxu0
    %v295 = vmax.f32 %v169, 0.0
    %v296 = vmax.f32 %v172, 0.0
    %v297 = vmax.f32 %v177, 0.0
    %v298 = vmax.f32 %v180, 0.0
    %v299 = vmax.f32 %v185, 0.0
    %v300 = vmax.f32 %v188, 0.0
    %v301 = vmax.f32 %v193, 0.0
    %v302 = vmax.f32 %v196, 0.0
    %v303 = vmax.f32 %v201, 0.0
    %v304 = vmax.f32 %v204, 0.0
    %v305 = vmax.f32 %v209, 0.0
    %v306 = vmax.f32 %v212, 0.0
    %v307 = vmax.f32 %v217, 0.0
    %v308 = vmax.f32 %v220, 0.0
    %v309 = vmax.f32 %v225, 0.0
    %v310 = vmax.f32 %v228, 0.0
    %v311 = vmax.f32 %v233, 0.0
    %v312 = vmax.f32 %v236, 0.0
    %v313 = vmax.f32 %v241, 0.0
    %v314 = vmax.f32 %v244, 0.0
    %v315 = vmax.f32 %v249, 0.0
    %v316 = vmax.f32 %v252, 0.0
    %v317 = vmax.f32 %v257, 0.0
    %v318 = vmax.f32 %v260, 0.0
    %v319 = vmax.f32 %v265, 0.0
    %v320 = vmax.f32 %v268, 0.0
    %v321 = vmax.f32 %v273, 0.0
    %v322 = vmax.f32 %v276, 0.0
    %v323 = vmax.f32 %v281, 0.0
    %v324 = vmax.f32 %v284, 0.0
    %v325 = vmax.f32 %v289, 0.0
    %v326 = vmax.f32 %v292, 0.0
    %v327 = vld [vmem:[%s3] sm:$0x1]
    %v329 = vlaneseq
    %v330 = vshrl.u32 %v329, 7
    %v331 = vsub.s32 0, %v330
    %v332 = vrot.slane %v327, %v331
    %v334 = vmul.f32 %v295, %v332
    %v335 = vmul.f32 %v296, %v332
    %v336 = vmul.f32 %v297, %v332
    %v337 = vmul.f32 %v298, %v332
    %v338 = vmul.f32 %v299, %v332
    %v339 = vmul.f32 %v300, %v332
    %v340 = vmul.f32 %v301, %v332
    %v341 = vmul.f32 %v302, %v332
    %v342 = vmul.f32 %v303, %v332
    %v343 = vmul.f32 %v304, %v332
    %v344 = vmul.f32 %v305, %v332
    %v345 = vmul.f32 %v306, %v332
    %v346 = vmul.f32 %v307, %v332
    %v347 = vmul.f32 %v308, %v332
    %v348 = vmul.f32 %v309, %v332
    %v349 = vmul.f32 %v310, %v332
    %v350 = vmul.f32 %v311, %v332
    %v351 = vmul.f32 %v312, %v332
    %v352 = vmul.f32 %v313, %v332
    %v353 = vmul.f32 %v314, %v332
    %v354 = vmul.f32 %v315, %v332
    %v355 = vmul.f32 %v316, %v332
    %v356 = vmul.f32 %v317, %v332
    %v357 = vmul.f32 %v318, %v332
    %v358 = vmul.f32 %v319, %v332
    %v359 = vmul.f32 %v320, %v332
    %v360 = vmul.f32 %v321, %v332
    %v361 = vmul.f32 %v322, %v332
    %v362 = vmul.f32 %v323, %v332
    %v363 = vmul.f32 %v324, %v332
    %v364 = vmul.f32 %v325, %v332
    %v365 = vmul.f32 %v326, %v332
    %vm366 = vcmask 261120
    %v367 = vsel %vm366, %v334, 0.0
    %368 = vadd.xlane.f32.xlu0 %v367
    %v369 = vpop.xlane.xlu0 %368
    %v370 = vsel %vm366, %v335, 0.0
    %371 = vadd.xlane.f32.xlu0 %v370
    %v372 = vpop.xlane.xlu0 %371
    %v373 = vsel %vm366, %v336, 0.0
    %374 = vadd.xlane.f32.xlu0 %v373
    %v375 = vpop.xlane.xlu0 %374
    %v376 = vsel %vm366, %v337, 0.0
    %377 = vadd.xlane.f32.xlu0 %v376
    %v378 = vpop.xlane.xlu0 %377
    %v379 = vsel %vm366, %v338, 0.0
    %380 = vadd.xlane.f32.xlu0 %v379
    %v381 = vpop.xlane.xlu0 %380
    %v382 = vsel %vm366, %v339, 0.0
    %383 = vadd.xlane.f32.xlu0 %v382
    %v384 = vpop.xlane.xlu0 %383
    %v385 = vsel %vm366, %v340, 0.0
    %386 = vadd.xlane.f32.xlu0 %v385
    %v387 = vpop.xlane.xlu0 %386
    %v388 = vsel %vm366, %v341, 0.0
    %389 = vadd.xlane.f32.xlu0 %v388
    %v390 = vpop.xlane.xlu0 %389
    %v391 = vsel %vm366, %v342, 0.0
    %392 = vadd.xlane.f32.xlu0 %v391
    %v393 = vpop.xlane.xlu0 %392
    %v394 = vsel %vm366, %v343, 0.0
    %395 = vadd.xlane.f32.xlu0 %v394
    %v396 = vpop.xlane.xlu0 %395
    %v397 = vsel %vm366, %v344, 0.0
    %398 = vadd.xlane.f32.xlu0 %v397
    %v399 = vpop.xlane.xlu0 %398
    %v400 = vsel %vm366, %v345, 0.0
    %401 = vadd.xlane.f32.xlu0 %v400
    %v402 = vpop.xlane.xlu0 %401
    %v403 = vsel %vm366, %v346, 0.0
    %404 = vadd.xlane.f32.xlu0 %v403
    %v405 = vpop.xlane.xlu0 %404
    %v406 = vsel %vm366, %v347, 0.0
    %407 = vadd.xlane.f32.xlu0 %v406
    %v408 = vpop.xlane.xlu0 %407
    %v409 = vsel %vm366, %v348, 0.0
    %410 = vadd.xlane.f32.xlu0 %v409
    %v411 = vpop.xlane.xlu0 %410
    %v412 = vsel %vm366, %v349, 0.0
    %413 = vadd.xlane.f32.xlu0 %v412
    %v414 = vpop.xlane.xlu0 %413
    %v415 = vsel %vm366, %v350, 0.0
    %416 = vadd.xlane.f32.xlu0 %v415
    %v417 = vpop.xlane.xlu0 %416
    %v418 = vsel %vm366, %v351, 0.0
    %419 = vadd.xlane.f32.xlu0 %v418
    %v420 = vpop.xlane.xlu0 %419
    %v421 = vsel %vm366, %v352, 0.0
    %422 = vadd.xlane.f32.xlu0 %v421
    %v423 = vpop.xlane.xlu0 %422
    %v424 = vsel %vm366, %v353, 0.0
    %425 = vadd.xlane.f32.xlu0 %v424
    %v426 = vpop.xlane.xlu0 %425
    %v427 = vsel %vm366, %v354, 0.0
    %428 = vadd.xlane.f32.xlu0 %v427
    %v429 = vpop.xlane.xlu0 %428
    %v430 = vsel %vm366, %v355, 0.0
    %431 = vadd.xlane.f32.xlu0 %v430
    %v432 = vpop.xlane.xlu0 %431
    %v433 = vsel %vm366, %v356, 0.0
    %434 = vadd.xlane.f32.xlu0 %v433
    %v435 = vpop.xlane.xlu0 %434
    %v436 = vsel %vm366, %v357, 0.0
    %437 = vadd.xlane.f32.xlu0 %v436
    %v438 = vpop.xlane.xlu0 %437
    %v439 = vsel %vm366, %v358, 0.0
    %440 = vadd.xlane.f32.xlu0 %v439
    %v441 = vpop.xlane.xlu0 %440
    %v442 = vsel %vm366, %v359, 0.0
    %443 = vadd.xlane.f32.xlu0 %v442
    %v444 = vpop.xlane.xlu0 %443
    %v445 = vsel %vm366, %v360, 0.0
    %446 = vadd.xlane.f32.xlu0 %v445
    %v447 = vpop.xlane.xlu0 %446
    %v448 = vsel %vm366, %v361, 0.0
    %449 = vadd.xlane.f32.xlu0 %v448
    %v450 = vpop.xlane.xlu0 %449
    %v451 = vsel %vm366, %v362, 0.0
    %452 = vadd.xlane.f32.xlu0 %v451
    %v453 = vpop.xlane.xlu0 %452
    %v454 = vsel %vm366, %v363, 0.0
    %455 = vadd.xlane.f32.xlu0 %v454
    %v456 = vpop.xlane.xlu0 %455
    %v457 = vsel %vm366, %v364, 0.0
    %458 = vadd.xlane.f32.xlu0 %v457
    %v459 = vpop.xlane.xlu0 %458
    %v460 = vsel %vm366, %v365, 0.0
    %461 = vadd.xlane.f32.xlu0 %v460
    %v462 = vpop.xlane.xlu0 %461
    %s463 = sld [smem:[#allocation2]]
    %v464 = vstv %s463
    %v465 = vadd.f32 %v369, %v464
    %v466 = vadd.f32 %v372, %v464
    %v467 = vadd.f32 %v375, %v464
    %v468 = vadd.f32 %v378, %v464
    %v469 = vadd.f32 %v381, %v464
    %v470 = vadd.f32 %v384, %v464
    %v471 = vadd.f32 %v387, %v464
    %v472 = vadd.f32 %v390, %v464
    %v473 = vadd.f32 %v393, %v464
    %v474 = vadd.f32 %v396, %v464
    %v475 = vadd.f32 %v399, %v464
    %v476 = vadd.f32 %v402, %v464
    %v477 = vadd.f32 %v405, %v464
    %v478 = vadd.f32 %v408, %v464
    %v479 = vadd.f32 %v411, %v464
    %v480 = vadd.f32 %v414, %v464
    %v481 = vadd.f32 %v417, %v464
    %v482 = vadd.f32 %v420, %v464
    %v483 = vadd.f32 %v423, %v464
    %v484 = vadd.f32 %v426, %v464
    %v485 = vadd.f32 %v429, %v464
    %v486 = vadd.f32 %v432, %v464
    %v487 = vadd.f32 %v435, %v464
    %v488 = vadd.f32 %v438, %v464
    %v489 = vadd.f32 %v441, %v464
    %v490 = vadd.f32 %v444, %v464
    %v491 = vadd.f32 %v447, %v464
    %v492 = vadd.f32 %v450, %v464
    %v493 = vadd.f32 %v453, %v464
    %v494 = vadd.f32 %v456, %v464
    %v495 = vadd.f32 %v459, %v464
    %v496 = vadd.f32 %v462, %v464
    %v497 = vand.u32 2147483647, %v465
    %v498 = vand.u32 2147483647, %v466
    %v499 = vand.u32 2147483647, %v467
    %v500 = vand.u32 2147483647, %v468
    %v501 = vand.u32 2147483647, %v469
    %v502 = vand.u32 2147483647, %v470
    %v503 = vand.u32 2147483647, %v471
    %v504 = vand.u32 2147483647, %v472
    %v505 = vand.u32 2147483647, %v473
    %v506 = vand.u32 2147483647, %v474
    %v507 = vand.u32 2147483647, %v475
    %v508 = vand.u32 2147483647, %v476
    %v509 = vand.u32 2147483647, %v477
    %v510 = vand.u32 2147483647, %v478
    %v511 = vand.u32 2147483647, %v479
    %v512 = vand.u32 2147483647, %v480
    %v513 = vand.u32 2147483647, %v481
    %v514 = vand.u32 2147483647, %v482
    %v515 = vand.u32 2147483647, %v483
    %v516 = vand.u32 2147483647, %v484
    %v517 = vand.u32 2147483647, %v485
    %v518 = vand.u32 2147483647, %v486
    %v519 = vand.u32 2147483647, %v487
    %v520 = vand.u32 2147483647, %v488
    %v521 = vand.u32 2147483647, %v489
    %v522 = vand.u32 2147483647, %v490
    %v523 = vand.u32 2147483647, %v491
    %v524 = vand.u32 2147483647, %v492
    %v525 = vand.u32 2147483647, %v493
    %v526 = vand.u32 2147483647, %v494
    %v527 = vand.u32 2147483647, %v495
    %v528 = vand.u32 2147483647, %v496
    %v529 = vsub.f32 0.0, %v497
    %v530 = vsub.f32 0.0, %v498
    %v531 = vsub.f32 0.0, %v499
    %v532 = vsub.f32 0.0, %v500
    %v533 = vsub.f32 0.0, %v501
    %v534 = vsub.f32 0.0, %v502
    %v535 = vsub.f32 0.0, %v503
    %v536 = vsub.f32 0.0, %v504
    %v537 = vsub.f32 0.0, %v505
    %v538 = vsub.f32 0.0, %v506
    %v539 = vsub.f32 0.0, %v507
    %v540 = vsub.f32 0.0, %v508
    %v541 = vsub.f32 0.0, %v509
    %v542 = vsub.f32 0.0, %v510
    %v543 = vsub.f32 0.0, %v511
    %v544 = vsub.f32 0.0, %v512
    %v545 = vsub.f32 0.0, %v513
    %v546 = vsub.f32 0.0, %v514
    %v547 = vsub.f32 0.0, %v515
    %v548 = vsub.f32 0.0, %v516
    %v549 = vsub.f32 0.0, %v517
    %v550 = vsub.f32 0.0, %v518
    %v551 = vsub.f32 0.0, %v519
    %v552 = vsub.f32 0.0, %v520
    %v553 = vsub.f32 0.0, %v521
    %v554 = vsub.f32 0.0, %v522
    %v555 = vsub.f32 0.0, %v523
    %v556 = vsub.f32 0.0, %v524
    %v557 = vsub.f32 0.0, %v525
    %v558 = vsub.f32 0.0, %v526
    %v559 = vsub.f32 0.0, %v527
    %v560 = vsub.f32 0.0, %v528
    %v561 = vmul.f32 %v529, 1.442695
    %v562 = vpow.pop %v561
    %v563 = vmul.f32 %v530, 1.442695
    %v564 = vpow.pop %v563
    %v565 = vmul.f32 %v531, 1.442695
    %v566 = vpow.pop %v565
    %v567 = vmul.f32 %v532, 1.442695
    %v568 = vpow.pop %v567
    %v569 = vmul.f32 %v533, 1.442695
    %v570 = vpow.pop %v569
    %v571 = vmul.f32 %v534, 1.442695
    %v572 = vpow.pop %v571
    %v573 = vmul.f32 %v535, 1.442695
    %v574 = vpow.pop %v573
    %v575 = vmul.f32 %v536, 1.442695
    %v576 = vpow.pop %v575
    %v577 = vmul.f32 %v537, 1.442695
    %v578 = vpow.pop %v577
    %v579 = vmul.f32 %v538, 1.442695
    %v580 = vpow.pop %v579
    %v581 = vmul.f32 %v539, 1.442695
    %v582 = vpow.pop %v581
    %v583 = vmul.f32 %v540, 1.442695
    %v584 = vpow.pop %v583
    %v585 = vmul.f32 %v541, 1.442695
    %v586 = vpow.pop %v585
    %v587 = vmul.f32 %v542, 1.442695
    %v588 = vpow.pop %v587
    %v589 = vmul.f32 %v543, 1.442695
    %v590 = vpow.pop %v589
    %v591 = vmul.f32 %v544, 1.442695
    %v592 = vpow.pop %v591
    %v593 = vmul.f32 %v545, 1.442695
    %v594 = vpow.pop %v593
    %v595 = vmul.f32 %v546, 1.442695
    %v596 = vpow.pop %v595
    %v597 = vmul.f32 %v547, 1.442695
    %v598 = vpow.pop %v597
    %v599 = vmul.f32 %v548, 1.442695
    %v600 = vpow.pop %v599
    %v601 = vmul.f32 %v549, 1.442695
    %v602 = vpow.pop %v601
    %v603 = vmul.f32 %v550, 1.442695
    %v604 = vpow.pop %v603
    %v605 = vmul.f32 %v551, 1.442695
    %v606 = vpow.pop %v605
    %v607 = vmul.f32 %v552, 1.442695
    %v608 = vpow.pop %v607
    %v609 = vmul.f32 %v553, 1.442695
    %v610 = vpow.pop %v609
    %v611 = vmul.f32 %v554, 1.442695
    %v612 = vpow.pop %v611
    %v613 = vmul.f32 %v555, 1.442695
    %v614 = vpow.pop %v613
    %v615 = vmul.f32 %v556, 1.442695
    %v616 = vpow.pop %v615
    %v617 = vmul.f32 %v557, 1.442695
    %v618 = vpow.pop %v617
    %v619 = vmul.f32 %v558, 1.442695
    %v620 = vpow.pop %v619
    %v621 = vmul.f32 %v559, 1.442695
    %v622 = vpow.pop %v621
    %v623 = vmul.f32 %v560, 1.442695
    %v624 = vpow.pop %v623
    %v625 = vadd.f32 %v562, 1.0
    %v626 = vadd.f32 %v564, 1.0
    %v627 = vadd.f32 %v566, 1.0
    %v628 = vadd.f32 %v568, 1.0
    %v629 = vadd.f32 %v570, 1.0
    %v630 = vadd.f32 %v572, 1.0
    %v631 = vadd.f32 %v574, 1.0
    %v632 = vadd.f32 %v576, 1.0
    %v633 = vadd.f32 %v578, 1.0
    %v634 = vadd.f32 %v580, 1.0
    %v635 = vadd.f32 %v582, 1.0
    %v636 = vadd.f32 %v584, 1.0
    %v637 = vadd.f32 %v586, 1.0
    %v638 = vadd.f32 %v588, 1.0
    %v639 = vadd.f32 %v590, 1.0
    %v640 = vadd.f32 %v592, 1.0
    %v641 = vadd.f32 %v594, 1.0
    %v642 = vadd.f32 %v596, 1.0
    %v643 = vadd.f32 %v598, 1.0
    %v644 = vadd.f32 %v600, 1.0
    %v645 = vadd.f32 %v602, 1.0
    %v646 = vadd.f32 %v604, 1.0
    %v647 = vadd.f32 %v606, 1.0
    %v648 = vadd.f32 %v608, 1.0
    %v649 = vadd.f32 %v610, 1.0
    %v650 = vadd.f32 %v612, 1.0
    %v651 = vadd.f32 %v614, 1.0
    %v652 = vadd.f32 %v616, 1.0
    %v653 = vadd.f32 %v618, 1.0
    %v654 = vadd.f32 %v620, 1.0
    %v655 = vadd.f32 %v622, 1.0
    %v656 = vadd.f32 %v624, 1.0
    %v657 = vrcp.pop %v625
    %v658 = vmul.f32 1.0, %v657
    %v659 = vrcp.pop %v626
    %v660 = vmul.f32 1.0, %v659
    %v661 = vrcp.pop %v627
    %v662 = vmul.f32 1.0, %v661
    %v663 = vrcp.pop %v628
    %v664 = vmul.f32 1.0, %v663
    %v665 = vrcp.pop %v629
    %v666 = vmul.f32 1.0, %v665
    %v667 = vrcp.pop %v630
    %v668 = vmul.f32 1.0, %v667
    %v669 = vrcp.pop %v631
    %v670 = vmul.f32 1.0, %v669
    %v671 = vrcp.pop %v632
    %v672 = vmul.f32 1.0, %v671
    %v673 = vrcp.pop %v633
    %v674 = vmul.f32 1.0, %v673
    %v675 = vrcp.pop %v634
    %v676 = vmul.f32 1.0, %v675
    %v677 = vrcp.pop %v635
    %v678 = vmul.f32 1.0, %v677
    %v679 = vrcp.pop %v636
    %v680 = vmul.f32 1.0, %v679
    %v681 = vrcp.pop %v637
    %v682 = vmul.f32 1.0, %v681
    %v683 = vrcp.pop %v638
    %v684 = vmul.f32 1.0, %v683
    %v685 = vrcp.pop %v639
    %v686 = vmul.f32 1.0, %v685
    %v687 = vrcp.pop %v640
    %v688 = vmul.f32 1.0, %v687
    %v689 = vrcp.pop %v641
    %v690 = vmul.f32 1.0, %v689
    %v691 = vrcp.pop %v642
    %v692 = vmul.f32 1.0, %v691
    %v693 = vrcp.pop %v643
    %v694 = vmul.f32 1.0, %v693
    %v695 = vrcp.pop %v644
    %v696 = vmul.f32 1.0, %v695
    %v697 = vrcp.pop %v645
    %v698 = vmul.f32 1.0, %v697
    %v699 = vrcp.pop %v646
    %v700 = vmul.f32 1.0, %v699
    %v701 = vrcp.pop %v647
    %v702 = vmul.f32 1.0, %v701
    %v703 = vrcp.pop %v648
    %v704 = vmul.f32 1.0, %v703
    %v705 = vrcp.pop %v649
    %v706 = vmul.f32 1.0, %v705
    %v707 = vrcp.pop %v650
    %v708 = vmul.f32 1.0, %v707
    %v709 = vrcp.pop %v651
    %v710 = vmul.f32 1.0, %v709
    %v711 = vrcp.pop %v652
    %v712 = vmul.f32 1.0, %v711
    %v713 = vrcp.pop %v653
    %v714 = vmul.f32 1.0, %v713
    %v715 = vrcp.pop %v654
    %v716 = vmul.f32 1.0, %v715
    %v717 = vrcp.pop %v655
    %v718 = vmul.f32 1.0, %v717
    %v719 = vrcp.pop %v656
    %v720 = vmul.f32 1.0, %v719
    %vm721 = vcmp.ge.f32.partialorder %v465, 0.0
    %vm722 = vcmp.ge.f32.partialorder %v466, 0.0
    %vm723 = vcmp.ge.f32.partialorder %v467, 0.0
    %vm724 = vcmp.ge.f32.partialorder %v468, 0.0
    %vm725 = vcmp.ge.f32.partialorder %v469, 0.0
    %vm726 = vcmp.ge.f32.partialorder %v470, 0.0
    %vm727 = vcmp.ge.f32.partialorder %v471, 0.0
    %vm728 = vcmp.ge.f32.partialorder %v472, 0.0
    %vm729 = vcmp.ge.f32.partialorder %v473, 0.0
    %vm730 = vcmp.ge.f32.partialorder %v474, 0.0
    %vm731 = vcmp.ge.f32.partialorder %v475, 0.0
    %vm732 = vcmp.ge.f32.partialorder %v476, 0.0
    %vm733 = vcmp.ge.f32.partialorder %v477, 0.0
    %vm734 = vcmp.ge.f32.partialorder %v478, 0.0
    %vm735 = vcmp.ge.f32.partialorder %v479, 0.0
    %vm736 = vcmp.ge.f32.partialorder %v480, 0.0
    %vm737 = vcmp.ge.f32.partialorder %v481, 0.0
    %vm738 = vcmp.ge.f32.partialorder %v482, 0.0
    %vm739 = vcmp.ge.f32.partialorder %v483, 0.0
    %vm740 = vcmp.ge.f32.partialorder %v484, 0.0
    %vm741 = vcmp.ge.f32.partialorder %v485, 0.0
    %vm742 = vcmp.ge.f32.partialorder %v486, 0.0
    %vm743 = vcmp.ge.f32.partialorder %v487, 0.0
    %vm744 = vcmp.ge.f32.partialorder %v488, 0.0
    %vm745 = vcmp.ge.f32.partialorder %v489, 0.0
    %vm746 = vcmp.ge.f32.partialorder %v490, 0.0
    %vm747 = vcmp.ge.f32.partialorder %v491, 0.0
    %vm748 = vcmp.ge.f32.partialorder %v492, 0.0
    %vm749 = vcmp.ge.f32.partialorder %v493, 0.0
    %vm750 = vcmp.ge.f32.partialorder %v494, 0.0
    %vm751 = vcmp.ge.f32.partialorder %v495, 0.0
    %vm752 = vcmp.ge.f32.partialorder %v496, 0.0
    %v753 = vsub.f32 1.0, %v658
    %v754 = vsub.f32 1.0, %v660
    %v755 = vsub.f32 1.0, %v662
    %v756 = vsub.f32 1.0, %v664
    %v757 = vsub.f32 1.0, %v666
    %v758 = vsub.f32 1.0, %v668
    %v759 = vsub.f32 1.0, %v670
    %v760 = vsub.f32 1.0, %v672
    %v761 = vsub.f32 1.0, %v674
    %v762 = vsub.f32 1.0, %v676
    %v763 = vsub.f32 1.0, %v678
    %v764 = vsub.f32 1.0, %v680
    %v765 = vsub.f32 1.0, %v682
    %v766 = vsub.f32 1.0, %v684
    %v767 = vsub.f32 1.0, %v686
    %v768 = vsub.f32 1.0, %v688
    %v769 = vsub.f32 1.0, %v690
    %v770 = vsub.f32 1.0, %v692
    %v771 = vsub.f32 1.0, %v694
    %v772 = vsub.f32 1.0, %v696
    %v773 = vsub.f32 1.0, %v698
    %v774 = vsub.f32 1.0, %v700
    %v775 = vsub.f32 1.0, %v702
    %v776 = vsub.f32 1.0, %v704
    %v777 = vsub.f32 1.0, %v706
    %v778 = vsub.f32 1.0, %v708
    %v779 = vsub.f32 1.0, %v710
    %v780 = vsub.f32 1.0, %v712
    %v781 = vsub.f32 1.0, %v714
    %v782 = vsub.f32 1.0, %v716
    %v783 = vsub.f32 1.0, %v718
    %v784 = vsub.f32 1.0, %v720
    %v785 = vsel %vm721, %v658, %v753
    %v786 = vsel %vm722, %v660, %v754
    %v787 = vsel %vm723, %v662, %v755
    %v788 = vsel %vm724, %v664, %v756
    %v789 = vsel %vm725, %v666, %v757
    %v790 = vsel %vm726, %v668, %v758
    %v791 = vsel %vm727, %v670, %v759
    %v792 = vsel %vm728, %v672, %v760
    %v793 = vsel %vm729, %v674, %v761
    %v794 = vsel %vm730, %v676, %v762
    %v795 = vsel %vm731, %v678, %v763
    %v796 = vsel %vm732, %v680, %v764
    %v797 = vsel %vm733, %v682, %v765
    %v798 = vsel %vm734, %v684, %v766
    %v799 = vsel %vm735, %v686, %v767
    %v800 = vsel %vm736, %v688, %v768
    %v801 = vsel %vm737, %v690, %v769
    %v802 = vsel %vm738, %v692, %v770
    %v803 = vsel %vm739, %v694, %v771
    %v804 = vsel %vm740, %v696, %v772
    %v805 = vsel %vm741, %v698, %v773
    %v806 = vsel %vm742, %v700, %v774
    %v807 = vsel %vm743, %v702, %v775
    %v808 = vsel %vm744, %v704, %v776
    %v809 = vsel %vm745, %v706, %v777
    %v810 = vsel %vm746, %v708, %v778
    %v811 = vsel %vm747, %v710, %v779
    %v812 = vsel %vm748, %v712, %v780
    %v813 = vsel %vm749, %v714, %v781
    %v814 = vsel %vm750, %v716, %v782
    %v815 = vsel %vm751, %v718, %v783
    %v816 = vsel %vm752, %v720, %v784
    %vm817 = vcmask 7168
    %818 = vst.msk [vmem:[#allocation3] sm:$0xff] %vm817, %v785
    %819 = vst.msk [vmem:[#allocation3 + $0x8] sm:$0xff] %vm817, %v786
    %820 = vst.msk [vmem:[#allocation3 + $0x10] sm:$0xff] %vm817, %v787
    %821 = vst.msk [vmem:[#allocation3 + $0x18] sm:$0xff] %vm817, %v788
    %822 = vst.msk [vmem:[#allocation3 + $0x20] sm:$0xff] %vm817, %v789
    %823 = vst.msk [vmem:[#allocation3 + $0x28] sm:$0xff] %vm817, %v790
    %824 = vst.msk [vmem:[#allocation3 + $0x30] sm:$0xff] %vm817, %v791
    %825 = vst.msk [vmem:[#allocation3 + $0x38] sm:$0xff] %vm817, %v792
    %826 = vst.msk [vmem:[#allocation3 + $0x40] sm:$0xff] %vm817, %v793
    %827 = vst.msk [vmem:[#allocation3 + $0x48] sm:$0xff] %vm817, %v794
    %828 = vst.msk [vmem:[#allocation3 + $0x50] sm:$0xff] %vm817, %v795
    %829 = vst.msk [vmem:[#allocation3 + $0x58] sm:$0xff] %vm817, %v796
    %830 = vst.msk [vmem:[#allocation3 + $0x60] sm:$0xff] %vm817, %v797
    %831 = vst.msk [vmem:[#allocation3 + $0x68] sm:$0xff] %vm817, %v798
    %832 = vst.msk [vmem:[#allocation3 + $0x70] sm:$0xff] %vm817, %v799
    %833 = vst.msk [vmem:[#allocation3 + $0x78] sm:$0xff] %vm817, %v800
    %834 = vst.msk [vmem:[#allocation3 + $0x80] sm:$0xff] %vm817, %v801
    %835 = vst.msk [vmem:[#allocation3 + $0x88] sm:$0xff] %vm817, %v802
    %836 = vst.msk [vmem:[#allocation3 + $0x90] sm:$0xff] %vm817, %v803
    %837 = vst.msk [vmem:[#allocation3 + $0x98] sm:$0xff] %vm817, %v804
    %838 = vst.msk [vmem:[#allocation3 + $0xa0] sm:$0xff] %vm817, %v805
    %839 = vst.msk [vmem:[#allocation3 + $0xa8] sm:$0xff] %vm817, %v806
    %840 = vst.msk [vmem:[#allocation3 + $0xb0] sm:$0xff] %vm817, %v807
    %841 = vst.msk [vmem:[#allocation3 + $0xb8] sm:$0xff] %vm817, %v808
    %842 = vst.msk [vmem:[#allocation3 + $0xc0] sm:$0xff] %vm817, %v809
    %843 = vst.msk [vmem:[#allocation3 + $0xc8] sm:$0xff] %vm817, %v810
    %844 = vst.msk [vmem:[#allocation3 + $0xd0] sm:$0xff] %vm817, %v811
    %845 = vst.msk [vmem:[#allocation3 + $0xd8] sm:$0xff] %vm817, %v812
    %846 = vst.msk [vmem:[#allocation3 + $0xe0] sm:$0xff] %vm817, %v813
    %847 = vst.msk [vmem:[#allocation3 + $0xe8] sm:$0xff] %vm817, %v814
    %848 = vst.msk [vmem:[#allocation3 + $0xf0] sm:$0xff] %vm817, %v815
    %849 = vst.msk [vmem:[#allocation3 + $0xf8] sm:$0xff] %vm817, %v816
    // Predicated region
    $region22: #{tpu_custom_call.1} parent=1 // pred_check
      _
    $region23: #{tpu_custom_call.1} parent=1 // pred_check_branch
      %851 = sbr.rel (0) target = $region25
    $region24: #{tpu_custom_call.1} parent=1 // pred_region
      // Predicated region
      $region26: #{tpu_custom_call.1} parent=24 // pred_check
        _
      $region27: #{tpu_custom_call.1} parent=24 // pred_check_branch
        %853 = sbr.rel (0) target = $region29
      $region28: #{tpu_custom_call.1} parent=24 // pred_region
        // Predicated region
        $region30: #{tpu_custom_call.1} parent=28 // pred_check
          _
        $region31: #{tpu_custom_call.1} parent=28 // pred_check_branch
          %855 = sbr.rel (0) target = $region33
        $region32: #{tpu_custom_call.1} parent=28 // pred_region
          // Predicated region
          $region45: #{tpu_custom_call.1} parent=32 // pred_check
            _
          $region46: #{tpu_custom_call.1} parent=32 // pred_check_branch
            %919 = sbr.rel (0) target = $region48
          $region47: #{tpu_custom_call.1} parent=32 // pred_region
            loop: start=0, step=1, limit=1
            $region49: #{tpu_custom_call.1} parent=47 // loop_pre_header
              _
            $region50: #{tpu_custom_call.1} parent=47 // loop_header
              %s921 = sphi 0, %s925
              %p922 = scmp.ge.s32.totalorder %s921, 1
              %s926 = sphi [#allocation3], [#allocation3]
              %s927 = sphi %s5, %s5
            $region51: #{tpu_custom_call.1} parent=47 // loop_header_branch
              %924 = sbr.rel (%p922) target = $region55
            $region52: #{tpu_custom_call.1} parent=47 // loop_body
              %v928 = vld [vmem:[%s926] sm:$0xff]
              %929 = vst [vmem:[%s927] sm:$0xff] %v928
              %v930 = vld [vmem:[%s926 + $0x8] sm:$0xff]
              %931 = vst [vmem:[%s927 + $0x8] sm:$0xff] %v930
              %v932 = vld [vmem:[%s926 + $0x10] sm:$0xff]
              %933 = vst [vmem:[%s927 + $0x10] sm:$0xff] %v932
              %v934 = vld [vmem:[%s926 + $0x18] sm:$0xff]
              %935 = vst [vmem:[%s927 + $0x18] sm:$0xff] %v934
              %v936 = vld [vmem:[%s926 + $0x20] sm:$0xff]
              %937 = vst [vmem:[%s927 + $0x20] sm:$0xff] %v936
              %v938 = vld [vmem:[%s926 + $0x28] sm:$0xff]
              %939 = vst [vmem:[%s927 + $0x28] sm:$0xff] %v938
              %v940 = vld [vmem:[%s926 + $0x30] sm:$0xff]
              %941 = vst [vmem:[%s927 + $0x30] sm:$0xff] %v940
              %v942 = vld [vmem:[%s926 + $0x38] sm:$0xff]
              %943 = vst [vmem:[%s927 + $0x38] sm:$0xff] %v942
              %v944 = vld [vmem:[%s926 + $0x40] sm:$0xff]
              %945 = vst [vmem:[%s927 + $0x40] sm:$0xff] %v944
              %v946 = vld [vmem:[%s926 + $0x48] sm:$0xff]
              %947 = vst [vmem:[%s927 + $0x48] sm:$0xff] %v946
              %v948 = vld [vmem:[%s926 + $0x50] sm:$0xff]
              %949 = vst [vmem:[%s927 + $0x50] sm:$0xff] %v948
              %v950 = vld [vmem:[%s926 + $0x58] sm:$0xff]
              %951 = vst [vmem:[%s927 + $0x58] sm:$0xff] %v950
              %v952 = vld [vmem:[%s926 + $0x60] sm:$0xff]
              %953 = vst [vmem:[%s927 + $0x60] sm:$0xff] %v952
              %v954 = vld [vmem:[%s926 + $0x68] sm:$0xff]
              %955 = vst [vmem:[%s927 + $0x68] sm:$0xff] %v954
              %v956 = vld [vmem:[%s926 + $0x70] sm:$0xff]
              %957 = vst [vmem:[%s927 + $0x70] sm:$0xff] %v956
              %v958 = vld [vmem:[%s926 + $0x78] sm:$0xff]
              %959 = vst [vmem:[%s927 + $0x78] sm:$0xff] %v958
              %v960 = vld [vmem:[%s926 + $0x80] sm:$0xff]
              %961 = vst [vmem:[%s927 + $0x80] sm:$0xff] %v960
              %v962 = vld [vmem:[%s926 + $0x88] sm:$0xff]
              %963 = vst [vmem:[%s927 + $0x88] sm:$0xff] %v962
              %v964 = vld [vmem:[%s926 + $0x90] sm:$0xff]
              %965 = vst [vmem:[%s927 + $0x90] sm:$0xff] %v964
              %v966 = vld [vmem:[%s926 + $0x98] sm:$0xff]
              %967 = vst [vmem:[%s927 + $0x98] sm:$0xff] %v966
              %v968 = vld [vmem:[%s926 + $0xa0] sm:$0xff]
              %969 = vst [vmem:[%s927 + $0xa0] sm:$0xff] %v968
              %v970 = vld [vmem:[%s926 + $0xa8] sm:$0xff]
              %971 = vst [vmem:[%s927 + $0xa8] sm:$0xff] %v970
              %v972 = vld [vmem:[%s926 + $0xb0] sm:$0xff]
              %973 = vst [vmem:[%s927 + $0xb0] sm:$0xff] %v972
              %v974 = vld [vmem:[%s926 + $0xb8] sm:$0xff]
              %975 = vst [vmem:[%s927 + $0xb8] sm:$0xff] %v974
              %v976 = vld [vmem:[%s926 + $0xc0] sm:$0xff]
              %977 = vst [vmem:[%s927 + $0xc0] sm:$0xff] %v976
            $region53: #{tpu_custom_call.1} parent=47 // loop_footer
              %s925 = sadd.s32 1, %s921
            $region54: #{tpu_custom_call.1} parent=47 // loop_footer_branch
              %920 = sbr.rel target = $region50
            $region55: #{tpu_custom_call.1} parent=47 // loop_exit
              _
          $region48: #{tpu_custom_call.1} parent=32 // pred_fallthru
            _
          // Predicated region
          $region56: #{tpu_custom_call.1} parent=32 // pred_check
            _
          $region57: #{tpu_custom_call.1} parent=32 // pred_check_branch
            %979 = sbr.rel target = $region59
          $region58: #{tpu_custom_call.1} parent=32 // pred_region
            _
          $region59: #{tpu_custom_call.1} parent=32 // pred_fallthru
            _
        $region33: #{tpu_custom_call.1} parent=28 // pred_fallthru
          _
        // Predicated region
        $region34: #{tpu_custom_call.1} parent=28 // pred_check
          _
        $region35: #{tpu_custom_call.1} parent=28 // pred_check_branch
          %857 = sbr.rel target = $region37
        $region36: #{tpu_custom_call.1} parent=28 // pred_region
          %s859 = ssub.s32 256, 1
          loop: start=0, step=1, limit=1
          $region38: #{tpu_custom_call.1} parent=36 // loop_pre_header
            _
          $region39: #{tpu_custom_call.1} parent=36 // loop_header
            %s861 = sphi 0, %s865
            %p862 = scmp.ge.s32.totalorder %s861, 1
            %s866 = sphi [#allocation3], [#allocation3]
            %s867 = sphi %s5, %s5
          $region40: #{tpu_custom_call.1} parent=36 // loop_header_branch
            %864 = sbr.rel (%p862) target = $region44
          $region41: #{tpu_custom_call.1} parent=36 // loop_body
            %v868 = vld [vmem:[%s866] sm:%s859]
            %869 = vst [vmem:[%s867] sm:%s859] %v868
            %v870 = vld [vmem:[%s866 + $0x8] sm:%s859]
            %871 = vst [vmem:[%s867 + $0x8] sm:%s859] %v870
            %v872 = vld [vmem:[%s866 + $0x10] sm:%s859]
            %873 = vst [vmem:[%s867 + $0x10] sm:%s859] %v872
            %v874 = vld [vmem:[%s866 + $0x18] sm:%s859]
            %875 = vst [vmem:[%s867 + $0x18] sm:%s859] %v874
            %v876 = vld [vmem:[%s866 + $0x20] sm:%s859]
            %877 = vst [vmem:[%s867 + $0x20] sm:%s859] %v876
            %v878 = vld [vmem:[%s866 + $0x28] sm:%s859]
            %879 = vst [vmem:[%s867 + $0x28] sm:%s859] %v878
            %v880 = vld [vmem:[%s866 + $0x30] sm:%s859]
            %881 = vst [vmem:[%s867 + $0x30] sm:%s859] %v880
            %v882 = vld [vmem:[%s866 + $0x38] sm:%s859]
            %883 = vst [vmem:[%s867 + $0x38] sm:%s859] %v882
            %v884 = vld [vmem:[%s866 + $0x40] sm:%s859]
            %885 = vst [vmem:[%s867 + $0x40] sm:%s859] %v884
            %v886 = vld [vmem:[%s866 + $0x48] sm:%s859]
            %887 = vst [vmem:[%s867 + $0x48] sm:%s859] %v886
            %v888 = vld [vmem:[%s866 + $0x50] sm:%s859]
            %889 = vst [vmem:[%s867 + $0x50] sm:%s859] %v888
            %v890 = vld [vmem:[%s866 + $0x58] sm:%s859]
            %891 = vst [vmem:[%s867 + $0x58] sm:%s859] %v890
            %v892 = vld [vmem:[%s866 + $0x60] sm:%s859]
            %893 = vst [vmem:[%s867 + $0x60] sm:%s859] %v892
            %v894 = vld [vmem:[%s866 + $0x68] sm:%s859]
            %895 = vst [vmem:[%s867 + $0x68] sm:%s859] %v894
            %v896 = vld [vmem:[%s866 + $0x70] sm:%s859]
            %897 = vst [vmem:[%s867 + $0x70] sm:%s859] %v896
            %v898 = vld [vmem:[%s866 + $0x78] sm:%s859]
            %899 = vst [vmem:[%s867 + $0x78] sm:%s859] %v898
            %v900 = vld [vmem:[%s866 + $0x80] sm:%s859]
            %901 = vst [vmem:[%s867 + $0x80] sm:%s859] %v900
            %v902 = vld [vmem:[%s866 + $0x88] sm:%s859]
            %903 = vst [vmem:[%s867 + $0x88] sm:%s859] %v902
            %v904 = vld [vmem:[%s866 + $0x90] sm:%s859]
            %905 = vst [vmem:[%s867 + $0x90] sm:%s859] %v904
            %v906 = vld [vmem:[%s866 + $0x98] sm:%s859]
            %907 = vst [vmem:[%s867 + $0x98] sm:%s859] %v906
            %v908 = vld [vmem:[%s866 + $0xa0] sm:%s859]
            %909 = vst [vmem:[%s867 + $0xa0] sm:%s859] %v908
            %v910 = vld [vmem:[%s866 + $0xa8] sm:%s859]
            %911 = vst [vmem:[%s867 + $0xa8] sm:%s859] %v910
            %v912 = vld [vmem:[%s866 + $0xb0] sm:%s859]
            %913 = vst [vmem:[%s867 + $0xb0] sm:%s859] %v912
            %v914 = vld [vmem:[%s866 + $0xb8] sm:%s859]
            %915 = vst [vmem:[%s867 + $0xb8] sm:%s859] %v914
            %v916 = vld [vmem:[%s866 + $0xc0] sm:%s859]
            %917 = vst [vmem:[%s867 + $0xc0] sm:%s859] %v916
          $region42: #{tpu_custom_call.1} parent=36 // loop_footer
            %s865 = sadd.s32 1, %s861
          $region43: #{tpu_custom_call.1} parent=36 // loop_footer_branch
            %860 = sbr.rel target = $region39
          $region44: #{tpu_custom_call.1} parent=36 // loop_exit
            _
        $region37: #{tpu_custom_call.1} parent=28 // pred_fallthru
          _
      $region29: #{tpu_custom_call.1} parent=24 // pred_fallthru
        _
      %980 = vnop
    $region25: #{tpu_custom_call.1} parent=1 // pred_fallthru
      _
    // Predicated region
    $region60: #{tpu_custom_call.1} parent=1 // pred_check
      _
    $region61: #{tpu_custom_call.1} parent=1 // pred_check_branch
      %982 = sbr.rel (0) target = $region63
    $region62: #{tpu_custom_call.1} parent=1 // pred_region
      _
    $region63: #{tpu_custom_call.1} parent=1 // pred_fallthru
      _

</llo_original>
